<compile_context>
chip_gen: v5e
topology: v5e:2x2
jax: 0.10.0
libtpu: 0.0.40
codegen_flags: <defaults>
</compile_context>

<pallas_src>
import functools

import jax
import jax.numpy as jnp
from jax.experimental import pallas as pl
from jax.experimental.pallas import tpu as pltpu

# TODO(synk): nn.Conv2d(kernel_size=8, stride=4) in __init__ is malformed
# (missing in/out channels) and is never used in forward(); it is omitted.


def _round_up(n: int, m: int) -> int:
    return ((n + m - 1) // m) * m


def _fused_mlp_kernel(x_ref, w_ref, b_ref, out_ref, *,
                      d_in: int, d_pad: int, h_pad: int, y_pad: int,
                      a_valid: int, logit_off: int):
    """One batch tile: shared h1/h2; emits probs (lanes [0,a)) and raw logits
    (lanes [logit_off, logit_off+a)) in a single lane-dense f32 output."""
    # bf16 operands for the MXU (cast in-kernel), f32 accumulation + f32
    # elementwise math (v5e VPU/EUP have no bf16 path).
    x = x_ref[...].astype(jnp.bfloat16)              # (TB, d_in)
    b = b_ref[...]                                   # (8, wmax) f32
    b1 = b[0:1, 0:h_pad]
    b2 = b[1:2, 0:h_pad]
    b3 = b[2:3, 0:y_pad]                             # b3 duplicated at both offsets

    w1 = w_ref[0:d_in, 0:h_pad]                      # bf16, VMEM-resident
    h1 = jnp.tanh(jnp.dot(x, w1, preferred_element_type=jnp.float32) + b1)

    w2 = w_ref[d_pad:d_pad + h_pad, 0:h_pad]
    h2 = jnp.tanh(jnp.dot(h1.astype(jnp.bfloat16), w2,
                          preferred_element_type=jnp.float32) + b2)

    # W3 is packed twice, so y holds the logits at lanes [0,a) (softmax copy)
    # AND at lanes [logit_off, logit_off+a) (raw critic copy); other lanes 0.
    w3 = w_ref[d_pad + h_pad:d_pad + 2 * h_pad, 0:y_pad]
    y = jnp.dot(h2.astype(jnp.bfloat16), w3,
                preferred_element_type=jnp.float32) + b3

    # Numerically-stable softmax over the real action lanes only.
    lane = jax.lax.broadcasted_iota(jnp.int32, y.shape, 1)
    shifted = jnp.where(lane < a_valid, y, -jnp.inf)
    m = jnp.max(shifted, axis=-1, keepdims=True)
    e = jnp.exp(shifted - m)                         # exactly 0 outside [0, a)
    probs = e / jnp.sum(e, axis=-1, keepdims=True)   # exact reciprocal

    # Merged output: probs in [0,a), raw logits in [logit_off, logit_off+a).
    out_ref[...] = probs + jnp.where(lane >= logit_off, y, 0.0)


def init_params(key, input_dim, hidden_dim, action_dim):
    """Matches the PyTorch module: weights ~ U[0,1) (nn.init.uniform_), biases 0."""
    k1, k2, k3 = jax.random.split(key, 3)
    return {
        "w1": jax.random.uniform(k1, (input_dim, hidden_dim), jnp.float32),
        "b1": jnp.zeros((1, hidden_dim), jnp.float32),
        "w2": jax.random.uniform(k2, (hidden_dim, hidden_dim), jnp.float32),
        "b2": jnp.zeros((1, hidden_dim), jnp.float32),
        "w3": jax.random.uniform(k3, (hidden_dim, action_dim), jnp.float32),
        "b3": jnp.zeros((1, action_dim), jnp.float32),
    }


def pack_params(params):
    """Pads H to 128 lanes, casts weights to bf16, packs W1/W2/W3 into one
    buffer and b1/b2/b3 into one (8, lanes) buffer.  W3/b3 are duplicated at
    lane offsets 0 and `logit_off` so one matmul serves both heads."""
    w1, w2, w3 = params["w1"], params["w2"], params["w3"]
    d_in, h = w1.shape
    a = w3.shape[1]
    d_pad = _round_up(d_in, 16)          # bf16 sublane tile = 16
    h_pad = _round_up(h, 128)
    a_pad = _round_up(a, 128)
    logit_off = 64 if a <= 64 else a_pad         # probs | logits lane split
    y_pad = _round_up(logit_off + a, 128)        # merged output lane width
    wmax = max(h_pad, y_pad)

    def pad2(w, rows, cols):
        return jnp.pad(w, ((0, rows - w.shape[0]), (0, cols - w.shape[1])))

    w3_dup = jnp.zeros((h, wmax), w3.dtype)
    w3_dup = w3_dup.at[:, 0:a].set(w3)
    w3_dup = w3_dup.at[:, logit_off:logit_off + a].set(w3)

    w_pack = jnp.concatenate(
        [pad2(w1, d_pad, wmax), pad2(w2, h_pad, wmax), pad2(w3_dup, h_pad, wmax)],
        axis=0).astype(jnp.bfloat16)

    b3 = params["b3"].reshape(-1)
    b_pack = jnp.zeros((8, wmax), jnp.float32)
    b_pack = b_pack.at[0, :h].set(params["b1"].reshape(-1))
    b_pack = b_pack.at[1, :h].set(params["b2"].reshape(-1))
    b_pack = b_pack.at[2, 0:a].set(b3)
    b_pack = b_pack.at[2, logit_off:logit_off + a].set(b3)

    meta = dict(d_in=d_in, h=h, a=a, d_pad=d_pad, h_pad=h_pad, a_pad=a_pad,
                y_pad=y_pad, logit_off=logit_off, wmax=wmax)
    return w_pack, b_pack, meta


def _pick_batch_tile(b_sz: int, tb: int) -> int:
    """nb >= 2 when the batch would fit in one tile (keeps both v7x TCs busy);
    otherwise the large default tile amortizes step overhead on v5e/v6e."""
    full = _round_up(b_sz, 8)
    if b_sz >= 16 and full <= tb:
        return _round_up((b_sz + 1) // 2, 8)
    return min(tb, full)


def make_forward(meta, *, tb=1024):
    """Returns a jitted forward(x, w_pack, b_pack) -> (probs, logits) that runs
    both PPO heads in a single pallas_call with one merged output slab."""
    d_in, a = meta["d_in"], meta["a"]
    d_pad, h_pad, y_pad, wmax, logit_off = (meta["d_pad"], meta["h_pad"],
                                            meta["y_pad"], meta["wmax"],
                                            meta["logit_off"])
    w_rows = d_pad + 2 * h_pad

    kernel = functools.partial(_fused_mlp_kernel, d_in=d_in, d_pad=d_pad,
                               h_pad=h_pad, y_pad=y_pad, a_valid=a,
                               logit_off=logit_off)

    @jax.jit
    def forward(x, w_pack, b_pack):
        b_sz = x.shape[0]
        tb_eff = _pick_batch_tile(b_sz, tb)
        b_pad = _round_up(b_sz, tb_eff)
        nb = b_pad // tb_eff

        # Raw f32 x streams straight in; only the batch rows are padded (and
        # only when needed) -> no wrapper-side cast/pad pass over the features.
        x_p = x if b_pad == b_sz else jnp.pad(x, ((0, b_pad - b_sz), (0, 0)))

        combined = pl.pallas_call(
            kernel,
            out_shape=jax.ShapeDtypeStruct((b_pad, y_pad), jnp.float32),
            grid=(nb,),
            in_specs=[
                pl.BlockSpec((tb_eff, d_in), lambda i: (i, 0)),   # x streams
                pl.BlockSpec((w_rows, wmax), lambda i: (0, 0)),   # weights stay
                pl.BlockSpec((8, wmax), lambda i: (0, 0)),        # biases stay
            ],
            out_specs=pl.BlockSpec((tb_eff, y_pad), lambda i: (i, 0)),
            compiler_params=pltpu.CompilerParams(
                dimension_semantics=("parallel",),   # v7x: shard batch on 2 TCs
                vmem_limit_bytes=32 * 1024 * 1024,   # explicit budget (v7x 64 MiB)
            ),
        )(x_p, w_pack, b_pack)

        # Tiny (B, a) slices of the merged slab (negligible vs. the old scheme
        # of writing + re-reading two full padded slabs).
        probs = combined[:b_sz, 0:a]
        logits = combined[:b_sz, logit_off:logit_off + a]
        return probs, logits

    return forward


def cnn_model_forward(forward, x, w_pack, b_pack, *, is_actor):
    """Single-head API matching CNNModel(is_actor=...): softmax or raw logits."""
    probs, logits = forward(x, w_pack, b_pack)
    return probs if is_actor else logits


def _reference_f32(x, params, is_actor):
    """Pure-f32 reference matching the PyTorch forward exactly."""
    h1 = jnp.tanh(x @ params["w1"] + params["b1"])
    h2 = jnp.tanh(h1 @ params["w2"] + params["b2"])
    y = h2 @ params["w3"] + params["b3"]
    return jax.nn.softmax(y, axis=-1) if is_actor else y


def _reference_bf16(x, params, is_actor):
    """Mirrors the kernel's numerics: bf16 matmul operands, f32 accumulation."""
    bf = lambda t: t.astype(jnp.bfloat16)
    dot = lambda l, r: jnp.dot(bf(l), bf(r), preferred_element_type=jnp.float32)
    h1 = jnp.tanh(dot(x, params["w1"]) + params["b1"])
    h2 = jnp.tanh(dot(h1, params["w2"]) + params["b2"])
    y = dot(h2, params["w3"]) + params["b3"]
    return jax.nn.softmax(y, axis=-1) if is_actor else y


if __name__ == "__main__":
    key = jax.random.PRNGKey(0)
    kx, kp = jax.random.split(key)

    B, INPUT_DIM, HIDDEN_DIM, ACTION_DIM = 256, 32, 32, 8

    x = jax.random.normal(kx, (B, INPUT_DIM), jnp.float32)
    params = init_params(kp, INPUT_DIM, HIDDEN_DIM, ACTION_DIM)
    w_pack, b_pack, meta = pack_params(params)

    forward = make_forward(meta)   # auto tile: B=256 -> 2 tiles of 128 (nb=2)

    probs, logits = jax.block_until_ready(forward(x, w_pack, b_pack))

    assert probs.shape == (B, ACTION_DIM)
    assert logits.shape == (B, ACTION_DIM)

    ref_probs = _reference_bf16(x, params, True)
    ref_logits = _reference_bf16(x, params, False)
    assert jnp.allclose(logits, ref_logits, atol=1e-2, rtol=1e-2), \
        float(jnp.max(jnp.abs(logits - ref_logits)))
    assert jnp.allclose(probs, ref_probs, atol=1e-2, rtol=1e-2), \
        float(jnp.max(jnp.abs(probs - ref_probs)))
    # Exact (non-approx) reciprocal in the kernel -> probs sum to 1 tightly.
    assert jnp.allclose(jnp.sum(probs, axis=-1), 1.0, atol=1e-4)

    # Single-head API (matches CNNModel(is_actor=True)) reuses the fused call.
    actor_out = cnn_model_forward(forward, x, w_pack, b_pack, is_actor=True)
    assert jnp.allclose(actor_out, probs)

    # Info only: drift vs. the pure-f32 PyTorch-equivalent forward is the
    # deliberate bf16 operand cast on the MXU path.
    _ = float(jnp.max(jnp.abs(logits - _reference_f32(x, params, False))))

    print("KERNEL_OK")
</pallas_src>

<mosaic_0001>
module attributes {stable_mosaic.version = 11 : i64} {
  func.func @_fused_mlp_kernel(%arg0: i32, %arg1: memref<128x32xf32, #tpu.memory_space<vmem>>, %arg2: memref<288x128xbf16, #tpu.memory_space<vmem>>, %arg3: memref<8x128xf32, #tpu.memory_space<vmem>>, %arg4: memref<128x128xf32, #tpu.memory_space<vmem>>) attributes {dimension_semantics = [#tpu.dimension_semantics<parallel>], iteration_bounds = array<i64: 2>, scalar_prefetch = 0 : i64, scratch_operands = 0 : i64, tpu.core_type = #tpu.core_type<tc>, window_params = [{transform_indices = @transform_0, window_bounds = array<i64: 128, 32>}, {pipeline_mode = #tpu.pipeline_mode<synchronous>, transform_indices = @transform_1, window_bounds = array<i64: 288, 128>}, {pipeline_mode = #tpu.pipeline_mode<synchronous>, transform_indices = @transform_2, window_bounds = array<i64: 8, 128>}, {transform_indices = @transform_3, window_bounds = array<i64: 128, 128>}]} {
    %c0 = arith.constant 0 : index
    %c0_0 = arith.constant 0 : index
    %0 = vector.load %arg1[%c0, %c0_0] : memref<128x32xf32, #tpu.memory_space<vmem>>, vector<128x32xf32>
    %1 = arith.truncf %0 : vector<128x32xf32> to vector<128x32xbf16>
    %c0_1 = arith.constant 0 : index
    %c0_2 = arith.constant 0 : index
    %2 = vector.load %arg3[%c0_1, %c0_2] : memref<8x128xf32, #tpu.memory_space<vmem>>, vector<8x128xf32>
    %3 = vector.extract_strided_slice %2 {offsets = [0, 0], sizes = [1, 128], strides = [1, 1]} : vector<8x128xf32> to vector<1x128xf32>
    %4 = vector.extract_strided_slice %2 {offsets = [1, 0], sizes = [1, 128], strides = [1, 1]} : vector<8x128xf32> to vector<1x128xf32>
    %5 = vector.extract_strided_slice %2 {offsets = [2, 0], sizes = [1, 128], strides = [1, 1]} : vector<8x128xf32> to vector<1x128xf32>
    %c0_3 = arith.constant 0 : index
    %c0_4 = arith.constant 0 : index
    %6 = vector.load %arg2[%c0_3, %c0_4] : memref<288x128xbf16, #tpu.memory_space<vmem>>, vector<32x128xbf16>
    %cst = arith.constant dense<0.000000e+00> : vector<128x128xf32>
    %7 = tpu.matmul %1, %6, %cst {dimension_numbers = #tpu.dot_dimension_numbers<[1], [0], [0], [1], [0, 0, 1, 1], [], []>} : vector<128x32xbf16>, vector<32x128xbf16>, vector<128x128xf32> -> vector<128x128xf32>
    %8 = vector.broadcast %3 : vector<1x128xf32> to vector<128x128xf32>
    %9 = arith.addf %7, %8 : vector<128x128xf32>
    %10 = math.tanh %9 : vector<128x128xf32>
    %c32 = arith.constant 32 : index
    %c0_5 = arith.constant 0 : index
    %11 = vector.load %arg2[%c32, %c0_5] : memref<288x128xbf16, #tpu.memory_space<vmem>>, vector<128x128xbf16>
    %12 = arith.truncf %10 : vector<128x128xf32> to vector<128x128xbf16>
    %cst_6 = arith.constant dense<0.000000e+00> : vector<128x128xf32>
    %13 = tpu.matmul %12, %11, %cst_6 {dimension_numbers = #tpu.dot_dimension_numbers<[1], [0], [0], [1], [0, 0, 1, 1], [], []>} : vector<128x128xbf16>, vector<128x128xbf16>, vector<128x128xf32> -> vector<128x128xf32>
    %14 = vector.broadcast %4 : vector<1x128xf32> to vector<128x128xf32>
    %15 = arith.addf %13, %14 : vector<128x128xf32>
    %16 = math.tanh %15 : vector<128x128xf32>
    %c160 = arith.constant 160 : index
    %c0_7 = arith.constant 0 : index
    %17 = vector.load %arg2[%c160, %c0_7] : memref<288x128xbf16, #tpu.memory_space<vmem>>, vector<128x128xbf16>
    %18 = arith.truncf %16 : vector<128x128xf32> to vector<128x128xbf16>
    %cst_8 = arith.constant dense<0.000000e+00> : vector<128x128xf32>
    %19 = tpu.matmul %18, %17, %cst_8 {dimension_numbers = #tpu.dot_dimension_numbers<[1], [0], [0], [1], [0, 0, 1, 1], [], []>} : vector<128x128xbf16>, vector<128x128xbf16>, vector<128x128xf32> -> vector<128x128xf32>
    %20 = vector.broadcast %5 : vector<1x128xf32> to vector<128x128xf32>
    %21 = arith.addf %19, %20 : vector<128x128xf32>
    %22 = tpu.iota {dimensions = array<i32: 1>} : vector<128x128xi32>
    %c8_i32 = arith.constant 8 : i32
    %23 = vector.broadcast %c8_i32 : i32 to vector<128x128xi32>
    %24 = arith.cmpi slt, %22, %23 : vector<128x128xi32>
    %cst_9 = arith.constant 0xFF800000 : f32
    %25 = vector.broadcast %cst_9 : f32 to vector<128x128xf32>
    %26 = arith.select %24, %21, %25 : vector<128x128xi1>, vector<128x128xf32>
    %cst_10 = arith.constant dense<0xFF800000> : vector<128xf32>
    %27 = vector.multi_reduction <maximumf>, %26, %cst_10 [1] : vector<128x128xf32> to vector<128xf32>
    %28 = vector.shape_cast %27 : vector<128xf32> to vector<128x1xf32>
    %29 = vector.broadcast %28 : vector<128x1xf32> to vector<128x128xf32>
    %30 = arith.subf %26, %29 : vector<128x128xf32>
    %31 = math.exp %30 : vector<128x128xf32>
    %cst_11 = arith.constant dense<0.000000e+00> : vector<128xf32>
    %32 = vector.multi_reduction <add>, %31, %cst_11 [1] : vector<128x128xf32> to vector<128xf32>
    %33 = vector.shape_cast %32 : vector<128xf32> to vector<128x1xf32>
    %34 = vector.broadcast %33 : vector<128x1xf32> to vector<128x128xf32>
    %35 = arith.divf %31, %34 : vector<128x128xf32>
    %c64_i32 = arith.constant 64 : i32
    %36 = vector.broadcast %c64_i32 : i32 to vector<128x128xi32>
    %37 = arith.cmpi sge, %22, %36 : vector<128x128xi32>
    %cst_12 = arith.constant 0.000000e+00 : f32
    %38 = vector.broadcast %cst_12 : f32 to vector<128x128xf32>
    %39 = arith.select %37, %21, %38 : vector<128x128xi1>, vector<128x128xf32>
    %40 = arith.addf %35, %39 : vector<128x128xf32>
    %c0_13 = arith.constant 0 : index
    %c0_14 = arith.constant 0 : index
    %41 = vector.load %arg4[%c0_13, %c0_14] : memref<128x128xf32, #tpu.memory_space<vmem>>, vector<128x128xf32>
    tpu.vector_store %arg4[%c0_13, %c0_14], %40 {strides = array<i32>} : memref<128x128xf32, #tpu.memory_space<vmem>>, vector<128x128xf32>,
    return
  }
  func.func @transform_0(%arg0: i32) -> (i32, i32) {
    %c0_i32 = arith.constant 0 : i32
    %c0_i32_0 = arith.constant 0 : i32
    return %arg0, %c0_i32 : i32, i32
  }
  func.func @transform_1(%arg0: i32) -> (i32, i32) {
    %c0_i32 = arith.constant 0 : i32
    %c0_i32_0 = arith.constant 0 : i32
    %c0_i32_1 = arith.constant 0 : i32
    return %c0_i32, %c0_i32_0 : i32, i32
  }
  func.func @transform_2(%arg0: i32) -> (i32, i32) {
    %c0_i32 = arith.constant 0 : i32
    %c0_i32_0 = arith.constant 0 : i32
    %c0_i32_1 = arith.constant 0 : i32
    return %c0_i32, %c0_i32_0 : i32, i32
  }
  func.func @transform_3(%arg0: i32) -> (i32, i32) {
    %c0_i32 = arith.constant 0 : i32
    %c0_i32_0 = arith.constant 0 : i32
    return %arg0, %c0_i32 : i32, i32
  }
}

</mosaic_0001>

<llo_original>
// kernel: forward.1
$region0: #{forward.1}
  #allocation0 [shape = 'u32[]', space=smem, size = 0x4, offset = 0x4, fixed_abs, tag = 'smem constant byte address 0x4 - core index']
  #allocation1 [shape = 'u32[72,128]{1,0:T(1,128)}', space=vmem, size = 0x9000, scoped, tag = 'internal scratch']
  %s0 = inlined_call_operand.vmem [shape: f32[256,32], index: 0, kind: input, shape index: {}]
  %s1 = inlined_call_operand.vmem [shape: bf16[288,128], index: 1, kind: input, shape index: {}]
  %s2 = inlined_call_operand.vmem [shape: f32[8,128], index: 2, kind: input, shape index: {}]
  %s3 = inlined_call_operand.vmem [shape: f32[256,128], index: 3, kind: output, shape index: {}]
  %s4 = sld [smem:[#allocation0]]
  $region45: #{forward.1} parent=0
    _
  %s6 = ssub.s32 1, %s4
  %s7 = scalar_select 0, %s6, %s4
  loop: start=0, step=1, limit=4
  $region2: #{forward.1} parent=0 // loop_pre_header
    _
  $region3: #{forward.1} parent=0 // loop_header
    %s9 = sphi 0, %s13
    %p10 = scmp.ge.s32.totalorder %s9, 4
    %s19 = sphi 0, %s21
    %s22 = sphi 0, %s19
    %s23 = sphi 0, %s22
    %s39 = sphi 0, %s23
    %s43 = sphi 0, %s43
    %s45 = sphi 0, %s43
    %s46 = sphi 0, %s45
    %s60 = sphi 0, %s46
    %s64 = sphi 0, %s64
    %s66 = sphi 0, %s64
    %s67 = sphi 0, %s66
    %s81 = sphi 0, %s67
    %s87 = sphi 0, %s89
    %s90 = sphi 0, %s87
    %s91 = sphi 0, %s90
    %s107 = sphi 0, %s91
  $region4: #{forward.1} parent=0 // loop_header_branch
    %12 = sbr.rel (%p10) target = $region8
  $region5: #{forward.1} parent=0 // loop_body
    %s14 = ssub.s32 %s9, 1
    %s15 = ssub.s32 %s9, 2
    %s16 = sadd.s32 %s9, 1
    %s17 = ssub.s32 %s9, %s16
    %p18 = scmp.eq.s32.totalorder %s17, 0
    %s20 = sadd.s32 %s19, 1
    %s21 = scalar_select %p18, %s19, %s20
    %p24 = pneg %p18
    %p25 = scmp.eq.s32.totalorder %s9, 1
    %p26 = por %p24, %p25
    %p27 = scmp.ne.s32.totalorder %s19, %s22
    %p28 = scmp.eq.s32.totalorder %s9, 0
    %p29 = por %p27, %p28
    %p30 = scmp.ne.s32.totalorder %s19, %s22
    %p31 = scmp.eq.s32.totalorder %s14, 1
    %p32 = por %p30, %p31
    %p33 = scmp.ne.s32.totalorder %s22, %s23
    %p34 = scmp.eq.s32.totalorder %s14, 0
    %p35 = por %p33, %p34
    %p36 = scmp.ne.s32.totalorder %s22, %s23
    %p37 = scmp.eq.s32.totalorder %s15, 1
    %p38 = por %p36, %p37
    %p40 = scmp.ne.s32.totalorder %s23, %s39
    %p41 = scmp.eq.s32.totalorder %s15, 0
    %p42 = por %p40, %p41
    %s44 = sadd.s32 %s43, 1
    %p47 = scmp.eq.s32.totalorder %s9, 1
    %p48 = scmp.ne.s32.totalorder %s43, %s45
    %p49 = scmp.eq.s32.totalorder %s9, 0
    %p50 = por %p48, %p49
    %p51 = scmp.ne.s32.totalorder %s43, %s45
    %p52 = scmp.eq.s32.totalorder %s14, 1
    %p53 = por %p51, %p52
    %p54 = scmp.ne.s32.totalorder %s45, %s46
    %p55 = scmp.eq.s32.totalorder %s14, 0
    %p56 = por %p54, %p55
    %p57 = scmp.ne.s32.totalorder %s45, %s46
    %p58 = scmp.eq.s32.totalorder %s15, 1
    %p59 = por %p57, %p58
    %p61 = scmp.ne.s32.totalorder %s46, %s60
    %p62 = scmp.eq.s32.totalorder %s15, 0
    %p63 = por %p61, %p62
    %s65 = sadd.s32 %s64, 1
    %p68 = scmp.eq.s32.totalorder %s9, 1
    %p69 = scmp.ne.s32.totalorder %s64, %s66
    %p70 = scmp.eq.s32.totalorder %s9, 0
    %p71 = por %p69, %p70
    %p72 = scmp.ne.s32.totalorder %s64, %s66
    %p73 = scmp.eq.s32.totalorder %s14, 1
    %p74 = por %p72, %p73
    %p75 = scmp.ne.s32.totalorder %s66, %s67
    %p76 = scmp.eq.s32.totalorder %s14, 0
    %p77 = por %p75, %p76
    %p78 = scmp.ne.s32.totalorder %s66, %s67
    %p79 = scmp.eq.s32.totalorder %s15, 1
    %p80 = por %p78, %p79
    %p82 = scmp.ne.s32.totalorder %s67, %s81
    %p83 = scmp.eq.s32.totalorder %s15, 0
    %p84 = por %p82, %p83
    %s85 = ssub.s32 %s9, %s16
    %p86 = scmp.eq.s32.totalorder %s85, 0
    %s88 = sadd.s32 %s87, 1
    %s89 = scalar_select %p86, %s87, %s88
    %p92 = pneg %p86
    %p93 = scmp.eq.s32.totalorder %s9, 1
    %p94 = por %p92, %p93
    %p95 = scmp.ne.s32.totalorder %s87, %s90
    %p96 = scmp.eq.s32.totalorder %s9, 0
    %p97 = por %p95, %p96
    %p98 = scmp.ne.s32.totalorder %s87, %s90
    %p99 = scmp.eq.s32.totalorder %s14, 1
    %p100 = por %p98, %p99
    %p101 = scmp.ne.s32.totalorder %s90, %s91
    %p102 = scmp.eq.s32.totalorder %s14, 0
    %p103 = por %p101, %p102
    %p104 = scmp.ne.s32.totalorder %s90, %s91
    %p105 = scmp.eq.s32.totalorder %s15, 1
    %p106 = por %p104, %p105
    %p108 = scmp.ne.s32.totalorder %s91, %s107
    %p109 = scmp.eq.s32.totalorder %s15, 0
    %p110 = por %p108, %p109
    %p111 = scmp.le.s32.totalorder 1, %s9
    %p112 = scmp.lt.s32.totalorder %s9, 3
    %p113 = pnand %p111, %p112
    %p114 = pneg %p113
    // Predicated region
    $region9: #{forward.1} parent=5 // pred_check
      _
    $region10: #{forward.1} parent=5 // pred_check_branch
      %116 = sbr.rel (%p113) target = $region12
    $region11: #{forward.1} parent=5 // pred_region
      %s117 = ssub.s32 %s9, 1
      // Predicated region
      $region13: #{forward.1} parent=11 // pred_check
        %p118 = pneg %p56
      $region14: #{forward.1} parent=11 // pred_check_branch
        %120 = sbr.rel (%p118) target = $region16
      $region15: #{forward.1} parent=11 // pred_region
        _
      $region16: #{forward.1} parent=11 // pred_fallthru
        _
      // Predicated region
      $region17: #{forward.1} parent=11 // pred_check
        %p121 = pneg %p77
      $region18: #{forward.1} parent=11 // pred_check_branch
        %123 = sbr.rel (%p121) target = $region20
      $region19: #{forward.1} parent=11 // pred_region
        _
      $region20: #{forward.1} parent=11 // pred_fallthru
        _
    $region12: #{forward.1} parent=5 // pred_fallthru
      _
    %p124 = scmp.lt.s32.totalorder %s9, 2
    // Predicated region
    $region21: #{forward.1} parent=5 // pred_check
      %p125 = pneg %p124
    $region22: #{forward.1} parent=5 // pred_check_branch
      %127 = sbr.rel (%p125) target = $region24
    $region23: #{forward.1} parent=5 // pred_region
      // Predicated region
      $region25: #{forward.1} parent=23 // pred_check
        %p128 = pneg %p29
      $region26: #{forward.1} parent=23 // pred_check_branch
        %130 = sbr.rel (%p128) target = $region28
      $region27: #{forward.1} parent=23 // pred_region
        %s131 = smul.u32 16, %s9
        %p132 = scmp.lt.s32.totalorder %s131, 31
        %s133 = scalar_select %p132, %s131, 31
        %s134 = smul.addr %s133, 8
        %s135 = scalar_lea.vmem %s0, %s134
        %s136 = smul.u32 16, %s9
      $region28: #{forward.1} parent=23 // pred_fallthru
        _
    $region24: #{forward.1} parent=5 // pred_fallthru
      _
    %p137 = scmp.le.s32.totalorder 1, %s9
    %p138 = scmp.lt.s32.totalorder %s9, 3
    %p139 = pnand %p137, %p138
    %p140 = pneg %p139
    // Predicated region
    $region29: #{forward.1} parent=5 // pred_check
      _
    $region30: #{forward.1} parent=5 // pred_check_branch
      %142 = sbr.rel (%p139) target = $region32
    $region31: #{forward.1} parent=5 // pred_region
      %s143 = ssub.s32 %s9, 1
      %s144 = smul.u32 16, %s14
      %p145 = scmp.lt.s32.totalorder %s144, 31
      %s146 = scalar_select %p145, %s144, 31
      %s147 = smul.addr %s146, 8
      %s148 = scalar_lea.vmem %s0, %s147
      %p149 = pneg %p35
      %p150 = pneg %p32
      %p151 = pneg %p56
      %p152 = pneg %p53
      %p153 = pneg %p77
      %p154 = pneg %p74
      %p155 = pneg %p103
      %p156 = pneg %p100
      %s157 = smul.u32 16, %s14
      %p158 = scmp.lt.s32.totalorder %s157, 31
      %s159 = scalar_select %p158, %s157, 31
      %s160 = smul.addr %s159, 8
      %s161 = scalar_lea.vmem %s3, %s160
      %s162 = smul.u32 16, %s14
      %p163 = scmp.lt.s32.totalorder %s162, 31
      %s164 = scalar_select %p163, %s162, 31
      %s165 = smul.addr %s164, 8
      %s166 = scalar_lea.vmem %s0, %s165
      %s167 = smul.u32 16, %s14
      %s168 = smul.u32 16, %s14
      %p169 = scmp.lt.s32.totalorder %s168, 31
      %s170 = scalar_select %p169, %s168, 31
      %s171 = smul.addr %s170, 8
      %s172 = scalar_lea.vmem %s3, %s171
      %s173 = smul.u32 16, %s14
      %v175 = vld [vmem:[%s166] sm:$0xff]
      %v176 = vld [vmem:[%s166 + $0x8] sm:$0xff]
      %v177 = vld [vmem:[%s166 + $0x10] sm:$0xff]
      %v178 = vld [vmem:[%s166 + $0x18] sm:$0xff]
      %v179 = vld [vmem:[%s166 + $0x20] sm:$0xff]
      %v180 = vld [vmem:[%s166 + $0x28] sm:$0xff]
      %v181 = vld [vmem:[%s166 + $0x30] sm:$0xff]
      %v182 = vld [vmem:[%s166 + $0x38] sm:$0xff]
      %v183 = vld [vmem:[%s166 + $0x40] sm:$0xff]
      %v184 = vld [vmem:[%s166 + $0x48] sm:$0xff]
      %v185 = vld [vmem:[%s166 + $0x50] sm:$0xff]
      %v186 = vld [vmem:[%s166 + $0x58] sm:$0xff]
      %v187 = vld [vmem:[%s166 + $0x60] sm:$0xff]
      %v188 = vld [vmem:[%s166 + $0x68] sm:$0xff]
      %v189 = vld [vmem:[%s166 + $0x70] sm:$0xff]
      %v190 = vld [vmem:[%s166 + $0x78] sm:$0xff]
      %v191 = vpack.c.bf16 %v176, %v175
      %v192 = vpack.c.bf16 %v178, %v177
      %v193 = vpack.c.bf16 %v180, %v179
      %v194 = vpack.c.bf16 %v182, %v181
      %v195 = vpack.c.bf16 %v184, %v183
      %v196 = vpack.c.bf16 %v186, %v185
      %v197 = vpack.c.bf16 %v188, %v187
      %v198 = vpack.c.bf16 %v190, %v189
      %v199 = vld [vmem:[%s2] sm:$0xff]
      %v200 = vld [vmem:[%s1] sm:$0xf]
      %v201 = vld [vmem:[%s1 + $0x4] sm:$0xf]
      %v202 = vld [vmem:[%s1 + $0x8] sm:$0xf]
      %v203 = vld [vmem:[%s1 + $0xc] sm:$0xf]
      %v204 = vperm.slane %v199, 0
      %v209 = vunpack.c.l.b16 %v200
      %v210 = vunpack.c.l.b16 %v201
      %v211 = vunpack.c.l.b16 %v202
      %v212 = vunpack.c.l.b16 %v203
      %v213 = vpack.c.b16 %v210, %v209
      %v214 = vpack.c.b16 %v212, %v211
      %vm217 = vcmask 261120
      %v219 = vsel %vm217, %v191, 0
      %v222 = vsel %vm217, %v192, 0
      %v225 = vsel %vm217, %v193, 0
      %v228 = vsel %vm217, %v194, 0
      %v231 = vsel %vm217, %v195, 0
      %v234 = vsel %vm217, %v196, 0
      %v237 = vsel %vm217, %v197, 0
      %v240 = vsel %vm217, %v198, 0
      %242 = vmatpush.bf16.msra.mxu0 0
      %243 = vmatpush.bf16.msra.mxu0 0
      %244 = vmatpush.bf16.msra.mxu0 0
      %245 = vmatpush.bf16.msra.mxu0 0
      %246 = vmatpush.bf16.msra.mxu0 0
      %247 = vmatpush.bf16.msra.mxu0 0
      %248 = vmatpush.bf16.msra.mxu0 %v214
      %249 = vmatpush.bf16.msra.mxu0 %v213
      %250 = vmatmul.bf16.gmra.mxu0 %v219
      %v251 = vpop.f32.mrf.mxu0
      %v252 = vadd.f32 %v204, %v251
      %v253 = vpop.f32.mrf.mxu0
      %v254 = vadd.f32 %v204, %v253
      %255 = vmatmul.bf16.gmra.mxu0 %v222
      %v256 = vpop.f32.mrf.mxu0
      %v257 = vadd.f32 %v204, %v256
      %v258 = vpop.f32.mrf.mxu0
      %v259 = vadd.f32 %v204, %v258
      %260 = vmatmul.bf16.gmra.mxu0 %v225
      %v261 = vpop.f32.mrf.mxu0
      %v262 = vadd.f32 %v204, %v261
      %v263 = vpop.f32.mrf.mxu0
      %v264 = vadd.f32 %v204, %v263
      %265 = vmatmul.bf16.gmra.mxu0 %v228
      %v266 = vpop.f32.mrf.mxu0
      %v267 = vadd.f32 %v204, %v266
      %v268 = vpop.f32.mrf.mxu0
      %v269 = vadd.f32 %v204, %v268
      %270 = vmatmul.bf16.gmra.mxu0 %v231
      %v271 = vpop.f32.mrf.mxu0
      %v272 = vadd.f32 %v204, %v271
      %v273 = vpop.f32.mrf.mxu0
      %v274 = vadd.f32 %v204, %v273
      %275 = vmatmul.bf16.gmra.mxu0 %v234
      %v276 = vpop.f32.mrf.mxu0
      %v277 = vadd.f32 %v204, %v276
      %v278 = vpop.f32.mrf.mxu0
      %v279 = vadd.f32 %v204, %v278
      %280 = vmatmul.bf16.gmra.mxu0 %v237
      %v281 = vpop.f32.mrf.mxu0
      %v282 = vadd.f32 %v204, %v281
      %v283 = vpop.f32.mrf.mxu0
      %v284 = vadd.f32 %v204, %v283
      %285 = vmatmul.bf16.gmra.mxu0 %v240
      %v286 = vpop.f32.mrf.mxu0
      %v287 = vadd.f32 %v204, %v286
      %v288 = vpop.f32.mrf.mxu0
      %v289 = vadd.f32 %v204, %v288
      %290 = vdwg.mxu0
      %v291 = vtanh.pop %v252
      %v292 = vtanh.pop %v254
      %v293 = vtanh.pop %v257
      %v294 = vtanh.pop %v259
      %v295 = vtanh.pop %v262
      %v296 = vtanh.pop %v264
      %v297 = vtanh.pop %v267
      %v298 = vtanh.pop %v269
      %v299 = vtanh.pop %v272
      %v300 = vtanh.pop %v274
      %v301 = vtanh.pop %v277
      %v302 = vtanh.pop %v279
      %v303 = vtanh.pop %v282
      %v304 = vtanh.pop %v284
      %v305 = vtanh.pop %v287
      %v306 = vtanh.pop %v289
      %v307 = vld [vmem:[%s1 + $0x10] sm:$0xf]
      %v308 = vld [vmem:[%s1 + $0x14] sm:$0xf]
      %v309 = vld [vmem:[%s1 + $0x18] sm:$0xf]
      %v310 = vld [vmem:[%s1 + $0x1c] sm:$0xf]
      %v311 = vld [vmem:[%s1 + $0x20] sm:$0xf]
      %v312 = vld [vmem:[%s1 + $0x24] sm:$0xf]
      %v313 = vld [vmem:[%s1 + $0x28] sm:$0xf]
      %v314 = vld [vmem:[%s1 + $0x2c] sm:$0xf]
      %v315 = vld [vmem:[%s1 + $0x30] sm:$0xf]
      %v316 = vld [vmem:[%s1 + $0x34] sm:$0xf]
      %v317 = vld [vmem:[%s1 + $0x38] sm:$0xf]
      %v318 = vld [vmem:[%s1 + $0x3c] sm:$0xf]
      %v319 = vld [vmem:[%s1 + $0x40] sm:$0xf]
      %v320 = vld [vmem:[%s1 + $0x44] sm:$0xf]
      %v321 = vld [vmem:[%s1 + $0x48] sm:$0xf]
      %v322 = vld [vmem:[%s1 + $0x4c] sm:$0xf]
      %v323 = vpack.c.bf16 %v292, %v291
      %v324 = vpack.c.bf16 %v294, %v293
      %v325 = vpack.c.bf16 %v296, %v295
      %v326 = vpack.c.bf16 %v298, %v297
      %v327 = vpack.c.bf16 %v300, %v299
      %v328 = vpack.c.bf16 %v302, %v301
      %v329 = vpack.c.bf16 %v304, %v303
      %v330 = vpack.c.bf16 %v306, %v305
      %v331 = vperm.slane %v199, 1
      %v348 = vunpack.c.l.b16 %v307
      %v349 = vunpack.c.l.b16 %v308
      %v350 = vunpack.c.l.b16 %v309
      %v351 = vunpack.c.l.b16 %v310
      %v352 = vunpack.c.l.b16 %v311
      %v353 = vunpack.c.l.b16 %v312
      %v354 = vunpack.c.l.b16 %v313
      %v355 = vunpack.c.l.b16 %v314
      %v356 = vunpack.c.l.b16 %v315
      %v357 = vunpack.c.l.b16 %v316
      %v358 = vunpack.c.l.b16 %v317
      %v359 = vunpack.c.l.b16 %v318
      %v360 = vunpack.c.l.b16 %v319
      %v361 = vunpack.c.l.b16 %v320
      %v362 = vunpack.c.l.b16 %v321
      %v363 = vunpack.c.l.b16 %v322
      %v364 = vpack.c.b16 %v349, %v348
      %v365 = vpack.c.b16 %v351, %v350
      %v366 = vpack.c.b16 %v353, %v352
      %v367 = vpack.c.b16 %v355, %v354
      %v368 = vpack.c.b16 %v357, %v356
      %v369 = vpack.c.b16 %v359, %v358
      %v370 = vpack.c.b16 %v361, %v360
      %v371 = vpack.c.b16 %v363, %v362
      %380 = vmatpush.bf16.msra.mxu0 %v371
      %381 = vmatpush.bf16.msra.mxu0 %v370
      %382 = vmatpush.bf16.msra.mxu0 %v369
      %383 = vmatpush.bf16.msra.mxu0 %v368
      %384 = vmatpush.bf16.msra.mxu0 %v367
      %385 = vmatpush.bf16.msra.mxu0 %v366
      %386 = vmatpush.bf16.msra.mxu0 %v365
      %387 = vmatpush.bf16.msra.mxu0 %v364
      %388 = vmatmul.bf16.gmra.mxu0 %v323
      %v389 = vpop.f32.mrf.mxu0
      %v390 = vadd.f32 %v331, %v389
      %v391 = vpop.f32.mrf.mxu0
      %v392 = vadd.f32 %v331, %v391
      %393 = vmatmul.bf16.gmra.mxu0 %v324
      %v394 = vpop.f32.mrf.mxu0
      %v395 = vadd.f32 %v331, %v394
      %v396 = vpop.f32.mrf.mxu0
      %v397 = vadd.f32 %v331, %v396
      %398 = vmatmul.bf16.gmra.mxu0 %v325
      %v399 = vpop.f32.mrf.mxu0
      %v400 = vadd.f32 %v331, %v399
      %v401 = vpop.f32.mrf.mxu0
      %v402 = vadd.f32 %v331, %v401
      %403 = vmatmul.bf16.gmra.mxu0 %v326
      %v404 = vpop.f32.mrf.mxu0
      %v405 = vadd.f32 %v331, %v404
      %v406 = vpop.f32.mrf.mxu0
      %v407 = vadd.f32 %v331, %v406
      %408 = vmatmul.bf16.gmra.mxu0 %v327
      %v409 = vpop.f32.mrf.mxu0
      %v410 = vadd.f32 %v331, %v409
      %v411 = vpop.f32.mrf.mxu0
      %v412 = vadd.f32 %v331, %v411
      %413 = vmatmul.bf16.gmra.mxu0 %v328
      %v414 = vpop.f32.mrf.mxu0
      %v415 = vadd.f32 %v331, %v414
      %v416 = vpop.f32.mrf.mxu0
      %v417 = vadd.f32 %v331, %v416
      %418 = vmatmul.bf16.gmra.mxu0 %v329
      %v419 = vpop.f32.mrf.mxu0
      %v420 = vadd.f32 %v331, %v419
      %v421 = vpop.f32.mrf.mxu0
      %v422 = vadd.f32 %v331, %v421
      %423 = vmatmul.bf16.gmra.mxu0 %v330
      %v424 = vpop.f32.mrf.mxu0
      %v425 = vadd.f32 %v331, %v424
      %v426 = vpop.f32.mrf.mxu0
      %v427 = vadd.f32 %v331, %v426
      %428 = vdwg.mxu0
      %v429 = vtanh.pop %v390
      %v430 = vtanh.pop %v392
      %v431 = vtanh.pop %v395
      %v432 = vtanh.pop %v397
      %v433 = vtanh.pop %v400
      %v434 = vtanh.pop %v402
      %v435 = vtanh.pop %v405
      %v436 = vtanh.pop %v407
      %v437 = vtanh.pop %v410
      %v438 = vtanh.pop %v412
      %v439 = vtanh.pop %v415
      %v440 = vtanh.pop %v417
      %v441 = vtanh.pop %v420
      %v442 = vtanh.pop %v422
      %v443 = vtanh.pop %v425
      %v444 = vtanh.pop %v427
      %v445 = vld [vmem:[%s1 + $0x50] sm:$0xf]
      %v446 = vld [vmem:[%s1 + $0x54] sm:$0xf]
      %v447 = vld [vmem:[%s1 + $0x58] sm:$0xf]
      %v448 = vld [vmem:[%s1 + $0x5c] sm:$0xf]
      %v449 = vld [vmem:[%s1 + $0x60] sm:$0xf]
      %v450 = vld [vmem:[%s1 + $0x64] sm:$0xf]
      %v451 = vld [vmem:[%s1 + $0x68] sm:$0xf]
      %v452 = vld [vmem:[%s1 + $0x6c] sm:$0xf]
      %v453 = vld [vmem:[%s1 + $0x70] sm:$0xf]
      %v454 = vld [vmem:[%s1 + $0x74] sm:$0xf]
      %v455 = vld [vmem:[%s1 + $0x78] sm:$0xf]
      %v456 = vld [vmem:[%s1 + $0x7c] sm:$0xf]
      %v457 = vld [vmem:[%s1 + $0x80] sm:$0xf]
      %v458 = vld [vmem:[%s1 + $0x84] sm:$0xf]
      %v459 = vld [vmem:[%s1 + $0x88] sm:$0xf]
      %v460 = vld [vmem:[%s1 + $0x8c] sm:$0xf]
      %v461 = vpack.c.bf16 %v430, %v429
      %v462 = vpack.c.bf16 %v432, %v431
      %v463 = vpack.c.bf16 %v434, %v433
      %v464 = vpack.c.bf16 %v436, %v435
      %v465 = vpack.c.bf16 %v438, %v437
      %v466 = vpack.c.bf16 %v440, %v439
      %v467 = vpack.c.bf16 %v442, %v441
      %v468 = vpack.c.bf16 %v444, %v443
      %v469 = vperm.slane %v199, 2
      %v486 = vunpack.c.l.b16 %v445
      %v487 = vunpack.c.l.b16 %v446
      %v488 = vunpack.c.l.b16 %v447
      %v489 = vunpack.c.l.b16 %v448
      %v490 = vunpack.c.l.b16 %v449
      %v491 = vunpack.c.l.b16 %v450
      %v492 = vunpack.c.l.b16 %v451
      %v493 = vunpack.c.l.b16 %v452
      %v494 = vunpack.c.l.b16 %v453
      %v495 = vunpack.c.l.b16 %v454
      %v496 = vunpack.c.l.b16 %v455
      %v497 = vunpack.c.l.b16 %v456
      %v498 = vunpack.c.l.b16 %v457
      %v499 = vunpack.c.l.b16 %v458
      %v500 = vunpack.c.l.b16 %v459
      %v501 = vunpack.c.l.b16 %v460
      %v502 = vpack.c.b16 %v487, %v486
      %v503 = vpack.c.b16 %v489, %v488
      %v504 = vpack.c.b16 %v491, %v490
      %v505 = vpack.c.b16 %v493, %v492
      %v506 = vpack.c.b16 %v495, %v494
      %v507 = vpack.c.b16 %v497, %v496
      %v508 = vpack.c.b16 %v499, %v498
      %v509 = vpack.c.b16 %v501, %v500
      %518 = vmatpush.bf16.msra.mxu0 %v509
      %519 = vmatpush.bf16.msra.mxu0 %v508
      %520 = vmatpush.bf16.msra.mxu0 %v507
      %521 = vmatpush.bf16.msra.mxu0 %v506
      %522 = vmatpush.bf16.msra.mxu0 %v505
      %523 = vmatpush.bf16.msra.mxu0 %v504
      %524 = vmatpush.bf16.msra.mxu0 %v503
      %525 = vmatpush.bf16.msra.mxu0 %v502
      %526 = vmatmul.bf16.gmra.mxu0 %v461
      %v527 = vpop.f32.mrf.mxu0
      %v528 = vadd.f32 %v469, %v527
      %v529 = vpop.f32.mrf.mxu0
      %v530 = vadd.f32 %v469, %v529
      %531 = vmatmul.bf16.gmra.mxu0 %v462
      %v532 = vpop.f32.mrf.mxu0
      %v533 = vadd.f32 %v469, %v532
      %v534 = vpop.f32.mrf.mxu0
      %v535 = vadd.f32 %v469, %v534
      %536 = vmatmul.bf16.gmra.mxu0 %v463
      %v537 = vpop.f32.mrf.mxu0
      %v538 = vadd.f32 %v469, %v537
      %v539 = vpop.f32.mrf.mxu0
      %v540 = vadd.f32 %v469, %v539
      %541 = vmatmul.bf16.gmra.mxu0 %v464
      %v542 = vpop.f32.mrf.mxu0
      %v543 = vadd.f32 %v469, %v542
      %v544 = vpop.f32.mrf.mxu0
      %v545 = vadd.f32 %v469, %v544
      %546 = vmatmul.bf16.gmra.mxu0 %v465
      %v547 = vpop.f32.mrf.mxu0
      %v548 = vadd.f32 %v469, %v547
      %v549 = vpop.f32.mrf.mxu0
      %v550 = vadd.f32 %v469, %v549
      %551 = vmatmul.bf16.gmra.mxu0 %v466
      %v552 = vpop.f32.mrf.mxu0
      %v553 = vadd.f32 %v469, %v552
      %v554 = vpop.f32.mrf.mxu0
      %v555 = vadd.f32 %v469, %v554
      %556 = vmatmul.bf16.gmra.mxu0 %v467
      %v557 = vpop.f32.mrf.mxu0
      %v558 = vadd.f32 %v469, %v557
      %v559 = vpop.f32.mrf.mxu0
      %v560 = vadd.f32 %v469, %v559
      %561 = vmatmul.bf16.gmra.mxu0 %v468
      %v562 = vpop.f32.mrf.mxu0
      %v563 = vadd.f32 %v469, %v562
      %v564 = vpop.f32.mrf.mxu0
      %v565 = vadd.f32 %v469, %v564
      %566 = vdwg.mxu0
      %v567 = vlaneseq
      %v568 = vand.u32 %v567, 127
      %vm569 = vcmp.lt.s32.totalorder %v568, 8
      %v570 = vsel %vm569, %v528, -inf
      %v571 = vsel %vm569, %v530, -inf
      %v572 = vsel %vm569, %v533, -inf
      %v573 = vsel %vm569, %v535, -inf
      %v574 = vsel %vm569, %v538, -inf
      %v575 = vsel %vm569, %v540, -inf
      %v576 = vsel %vm569, %v543, -inf
      %v577 = vsel %vm569, %v545, -inf
      %v578 = vsel %vm569, %v548, -inf
      %v579 = vsel %vm569, %v550, -inf
      %v580 = vsel %vm569, %v553, -inf
      %v581 = vsel %vm569, %v555, -inf
      %v582 = vsel %vm569, %v558, -inf
      %v583 = vsel %vm569, %v560, -inf
      %v584 = vsel %vm569, %v563, -inf
      %v585 = vsel %vm569, %v565, -inf
      %586 = vmax.xlane.f32.xlu0 %v570
      %v587 = vpop.xlane.xlu0 %586
      %588 = vmax.xlane.f32.xlu0 %v571
      %v589 = vpop.xlane.xlu0 %588
      %590 = vmax.xlane.f32.xlu0 %v572
      %v591 = vpop.xlane.xlu0 %590
      %592 = vmax.xlane.f32.xlu0 %v573
      %v593 = vpop.xlane.xlu0 %592
      %594 = vmax.xlane.f32.xlu0 %v574
      %v595 = vpop.xlane.xlu0 %594
      %596 = vmax.xlane.f32.xlu0 %v575
      %v597 = vpop.xlane.xlu0 %596
      %598 = vmax.xlane.f32.xlu0 %v576
      %v599 = vpop.xlane.xlu0 %598
      %600 = vmax.xlane.f32.xlu0 %v577
      %v601 = vpop.xlane.xlu0 %600
      %602 = vmax.xlane.f32.xlu0 %v578
      %v603 = vpop.xlane.xlu0 %602
      %604 = vmax.xlane.f32.xlu0 %v579
      %v605 = vpop.xlane.xlu0 %604
      %606 = vmax.xlane.f32.xlu0 %v580
      %v607 = vpop.xlane.xlu0 %606
      %608 = vmax.xlane.f32.xlu0 %v581
      %v609 = vpop.xlane.xlu0 %608
      %610 = vmax.xlane.f32.xlu0 %v582
      %v611 = vpop.xlane.xlu0 %610
      %612 = vmax.xlane.f32.xlu0 %v583
      %v613 = vpop.xlane.xlu0 %612
      %614 = vmax.xlane.f32.xlu0 %v584
      %v615 = vpop.xlane.xlu0 %614
      %616 = vmax.xlane.f32.xlu0 %v585
      %v617 = vpop.xlane.xlu0 %616
      %v618 = vsub.f32 %v570, %v587
      %v619 = vsub.f32 %v571, %v589
      %v620 = vsub.f32 %v572, %v591
      %v621 = vsub.f32 %v573, %v593
      %v622 = vsub.f32 %v574, %v595
      %v623 = vsub.f32 %v575, %v597
      %v624 = vsub.f32 %v576, %v599
      %v625 = vsub.f32 %v577, %v601
      %v626 = vsub.f32 %v578, %v603
      %v627 = vsub.f32 %v579, %v605
      %v628 = vsub.f32 %v580, %v607
      %v629 = vsub.f32 %v581, %v609
      %v630 = vsub.f32 %v582, %v611
      %v631 = vsub.f32 %v583, %v613
      %v632 = vsub.f32 %v584, %v615
      %v633 = vsub.f32 %v585, %v617
      %v634 = vmul.f32 %v618, 1.442695
      %v635 = vpow.pop %v634
      %v636 = vmul.f32 %v619, 1.442695
      %v637 = vpow.pop %v636
      %v638 = vmul.f32 %v620, 1.442695
      %v639 = vpow.pop %v638
      %v640 = vmul.f32 %v621, 1.442695
      %v641 = vpow.pop %v640
      %v642 = vmul.f32 %v622, 1.442695
      %v643 = vpow.pop %v642
      %v644 = vmul.f32 %v623, 1.442695
      %v645 = vpow.pop %v644
      %v646 = vmul.f32 %v624, 1.442695
      %v647 = vpow.pop %v646
      %v648 = vmul.f32 %v625, 1.442695
      %v649 = vpow.pop %v648
      %v650 = vmul.f32 %v626, 1.442695
      %v651 = vpow.pop %v650
      %v652 = vmul.f32 %v627, 1.442695
      %v653 = vpow.pop %v652
      %v654 = vmul.f32 %v628, 1.442695
      %v655 = vpow.pop %v654
      %v656 = vmul.f32 %v629, 1.442695
      %v657 = vpow.pop %v656
      %v658 = vmul.f32 %v630, 1.442695
      %v659 = vpow.pop %v658
      %v660 = vmul.f32 %v631, 1.442695
      %v661 = vpow.pop %v660
      %v662 = vmul.f32 %v632, 1.442695
      %v663 = vpow.pop %v662
      %v664 = vmul.f32 %v633, 1.442695
      %v665 = vpow.pop %v664
      %666 = vadd.xlane.f32.xlu0 %v635
      %v667 = vpop.xlane.xlu0 %666
      %668 = vadd.xlane.f32.xlu0 %v637
      %v669 = vpop.xlane.xlu0 %668
      %670 = vadd.xlane.f32.xlu0 %v639
      %v671 = vpop.xlane.xlu0 %670
      %672 = vadd.xlane.f32.xlu0 %v641
      %v673 = vpop.xlane.xlu0 %672
      %674 = vadd.xlane.f32.xlu0 %v643
      %v675 = vpop.xlane.xlu0 %674
      %676 = vadd.xlane.f32.xlu0 %v645
      %v677 = vpop.xlane.xlu0 %676
      %678 = vadd.xlane.f32.xlu0 %v647
      %v679 = vpop.xlane.xlu0 %678
      %680 = vadd.xlane.f32.xlu0 %v649
      %v681 = vpop.xlane.xlu0 %680
      %682 = vadd.xlane.f32.xlu0 %v651
      %v683 = vpop.xlane.xlu0 %682
      %684 = vadd.xlane.f32.xlu0 %v653
      %v685 = vpop.xlane.xlu0 %684
      %686 = vadd.xlane.f32.xlu0 %v655
      %v687 = vpop.xlane.xlu0 %686
      %688 = vadd.xlane.f32.xlu0 %v657
      %v689 = vpop.xlane.xlu0 %688
      %690 = vadd.xlane.f32.xlu0 %v659
      %v691 = vpop.xlane.xlu0 %690
      %692 = vadd.xlane.f32.xlu0 %v661
      %v693 = vpop.xlane.xlu0 %692
      %694 = vadd.xlane.f32.xlu0 %v663
      %v695 = vpop.xlane.xlu0 %694
      %696 = vadd.xlane.f32.xlu0 %v665
      %v697 = vpop.xlane.xlu0 %696
      %v698 = vrcp.pop %v667
      %v699 = vmul.f32 %v667, %v698
      %v700 = vsub.f32 1.0, %v699
      %v701 = vmul.f32 %v698, %v700
      %v702 = vadd.f32 %v698, %v701
      %vm703 = vweird.f32 %v667
      %vm704 = vweird.f32 %v698
      %vm705 = vmor %vm703, %vm704
      %v706 = vsel %vm705, %v698, %v702
      %v707 = vand.u32 2147483647, %v667
      %vm708 = vcmp.eq.f32.partialorder %v707, 8.507059e+37
      %v709 = vand.u32 %v667, 2147483648
      %v710 = vor.u32 1.1754944e-38, %v709
      %v711 = vsel %vm708, %v710, %v706
      %v712 = vmul.f32 %v635, %v711
      %v713 = vrcp.pop %v669
      %v714 = vmul.f32 %v669, %v713
      %v715 = vsub.f32 1.0, %v714
      %v716 = vmul.f32 %v713, %v715
      %v717 = vadd.f32 %v713, %v716
      %vm718 = vweird.f32 %v669
      %vm719 = vweird.f32 %v713
      %vm720 = vmor %vm718, %vm719
      %v721 = vsel %vm720, %v713, %v717
      %v722 = vand.u32 2147483647, %v669
      %vm723 = vcmp.eq.f32.partialorder %v722, 8.507059e+37
      %v724 = vand.u32 %v669, 2147483648
      %v725 = vor.u32 1.1754944e-38, %v724
      %v726 = vsel %vm723, %v725, %v721
      %v727 = vmul.f32 %v637, %v726
      %v728 = vrcp.pop %v671
      %v729 = vmul.f32 %v671, %v728
      %v730 = vsub.f32 1.0, %v729
      %v731 = vmul.f32 %v728, %v730
      %v732 = vadd.f32 %v728, %v731
      %vm733 = vweird.f32 %v671
      %vm734 = vweird.f32 %v728
      %vm735 = vmor %vm733, %vm734
      %v736 = vsel %vm735, %v728, %v732
      %v737 = vand.u32 2147483647, %v671
      %vm738 = vcmp.eq.f32.partialorder %v737, 8.507059e+37
      %v739 = vand.u32 %v671, 2147483648
      %v740 = vor.u32 1.1754944e-38, %v739
      %v741 = vsel %vm738, %v740, %v736
      %v742 = vmul.f32 %v639, %v741
      %v743 = vrcp.pop %v673
      %v744 = vmul.f32 %v673, %v743
      %v745 = vsub.f32 1.0, %v744
      %v746 = vmul.f32 %v743, %v745
      %v747 = vadd.f32 %v743, %v746
      %vm748 = vweird.f32 %v673
      %vm749 = vweird.f32 %v743
      %vm750 = vmor %vm748, %vm749
      %v751 = vsel %vm750, %v743, %v747
      %v752 = vand.u32 2147483647, %v673
      %vm753 = vcmp.eq.f32.partialorder %v752, 8.507059e+37
      %v754 = vand.u32 %v673, 2147483648
      %v755 = vor.u32 1.1754944e-38, %v754
      %v756 = vsel %vm753, %v755, %v751
      %v757 = vmul.f32 %v641, %v756
      %v758 = vrcp.pop %v675
      %v759 = vmul.f32 %v675, %v758
      %v760 = vsub.f32 1.0, %v759
      %v761 = vmul.f32 %v758, %v760
      %v762 = vadd.f32 %v758, %v761
      %vm763 = vweird.f32 %v675
      %vm764 = vweird.f32 %v758
      %vm765 = vmor %vm763, %vm764
      %v766 = vsel %vm765, %v758, %v762
      %v767 = vand.u32 2147483647, %v675
      %vm768 = vcmp.eq.f32.partialorder %v767, 8.507059e+37
      %v769 = vand.u32 %v675, 2147483648
      %v770 = vor.u32 1.1754944e-38, %v769
      %v771 = vsel %vm768, %v770, %v766
      %v772 = vmul.f32 %v643, %v771
      %v773 = vrcp.pop %v677
      %v774 = vmul.f32 %v677, %v773
      %v775 = vsub.f32 1.0, %v774
      %v776 = vmul.f32 %v773, %v775
      %v777 = vadd.f32 %v773, %v776
      %vm778 = vweird.f32 %v677
      %vm779 = vweird.f32 %v773
      %vm780 = vmor %vm778, %vm779
      %v781 = vsel %vm780, %v773, %v777
      %v782 = vand.u32 2147483647, %v677
      %vm783 = vcmp.eq.f32.partialorder %v782, 8.507059e+37
      %v784 = vand.u32 %v677, 2147483648
      %v785 = vor.u32 1.1754944e-38, %v784
      %v786 = vsel %vm783, %v785, %v781
      %v787 = vmul.f32 %v645, %v786
      %v788 = vrcp.pop %v679
      %v789 = vmul.f32 %v679, %v788
      %v790 = vsub.f32 1.0, %v789
      %v791 = vmul.f32 %v788, %v790
      %v792 = vadd.f32 %v788, %v791
      %vm793 = vweird.f32 %v679
      %vm794 = vweird.f32 %v788
      %vm795 = vmor %vm793, %vm794
      %v796 = vsel %vm795, %v788, %v792
      %v797 = vand.u32 2147483647, %v679
      %vm798 = vcmp.eq.f32.partialorder %v797, 8.507059e+37
      %v799 = vand.u32 %v679, 2147483648
      %v800 = vor.u32 1.1754944e-38, %v799
      %v801 = vsel %vm798, %v800, %v796
      %v802 = vmul.f32 %v647, %v801
      %v803 = vrcp.pop %v681
      %v804 = vmul.f32 %v681, %v803
      %v805 = vsub.f32 1.0, %v804
      %v806 = vmul.f32 %v803, %v805
      %v807 = vadd.f32 %v803, %v806
      %vm808 = vweird.f32 %v681
      %vm809 = vweird.f32 %v803
      %vm810 = vmor %vm808, %vm809
      %v811 = vsel %vm810, %v803, %v807
      %v812 = vand.u32 2147483647, %v681
      %vm813 = vcmp.eq.f32.partialorder %v812, 8.507059e+37
      %v814 = vand.u32 %v681, 2147483648
      %v815 = vor.u32 1.1754944e-38, %v814
      %v816 = vsel %vm813, %v815, %v811
      %v817 = vmul.f32 %v649, %v816
      %v818 = vrcp.pop %v683
      %v819 = vmul.f32 %v683, %v818
      %v820 = vsub.f32 1.0, %v819
      %v821 = vmul.f32 %v818, %v820
      %v822 = vadd.f32 %v818, %v821
      %vm823 = vweird.f32 %v683
      %vm824 = vweird.f32 %v818
      %vm825 = vmor %vm823, %vm824
      %v826 = vsel %vm825, %v818, %v822
      %v827 = vand.u32 2147483647, %v683
      %vm828 = vcmp.eq.f32.partialorder %v827, 8.507059e+37
      %v829 = vand.u32 %v683, 2147483648
      %v830 = vor.u32 1.1754944e-38, %v829
      %v831 = vsel %vm828, %v830, %v826
      %v832 = vmul.f32 %v651, %v831
      %v833 = vrcp.pop %v685
      %v834 = vmul.f32 %v685, %v833
      %v835 = vsub.f32 1.0, %v834
      %v836 = vmul.f32 %v833, %v835
      %v837 = vadd.f32 %v833, %v836
      %vm838 = vweird.f32 %v685
      %vm839 = vweird.f32 %v833
      %vm840 = vmor %vm838, %vm839
      %v841 = vsel %vm840, %v833, %v837
      %v842 = vand.u32 2147483647, %v685
      %vm843 = vcmp.eq.f32.partialorder %v842, 8.507059e+37
      %v844 = vand.u32 %v685, 2147483648
      %v845 = vor.u32 1.1754944e-38, %v844
      %v846 = vsel %vm843, %v845, %v841
      %v847 = vmul.f32 %v653, %v846
      %v848 = vrcp.pop %v687
      %v849 = vmul.f32 %v687, %v848
      %v850 = vsub.f32 1.0, %v849
      %v851 = vmul.f32 %v848, %v850
      %v852 = vadd.f32 %v848, %v851
      %vm853 = vweird.f32 %v687
      %vm854 = vweird.f32 %v848
      %vm855 = vmor %vm853, %vm854
      %v856 = vsel %vm855, %v848, %v852
      %v857 = vand.u32 2147483647, %v687
      %vm858 = vcmp.eq.f32.partialorder %v857, 8.507059e+37
      %v859 = vand.u32 %v687, 2147483648
      %v860 = vor.u32 1.1754944e-38, %v859
      %v861 = vsel %vm858, %v860, %v856
      %v862 = vmul.f32 %v655, %v861
      %v863 = vrcp.pop %v689
      %v864 = vmul.f32 %v689, %v863
      %v865 = vsub.f32 1.0, %v864
      %v866 = vmul.f32 %v863, %v865
      %v867 = vadd.f32 %v863, %v866
      %vm868 = vweird.f32 %v689
      %vm869 = vweird.f32 %v863
      %vm870 = vmor %vm868, %vm869
      %v871 = vsel %vm870, %v863, %v867
      %v872 = vand.u32 2147483647, %v689
      %vm873 = vcmp.eq.f32.partialorder %v872, 8.507059e+37
      %v874 = vand.u32 %v689, 2147483648
      %v875 = vor.u32 1.1754944e-38, %v874
      %v876 = vsel %vm873, %v875, %v871
      %v877 = vmul.f32 %v657, %v876
      %v878 = vrcp.pop %v691
      %v879 = vmul.f32 %v691, %v878
      %v880 = vsub.f32 1.0, %v879
      %v881 = vmul.f32 %v878, %v880
      %v882 = vadd.f32 %v878, %v881
      %vm883 = vweird.f32 %v691
      %vm884 = vweird.f32 %v878
      %vm885 = vmor %vm883, %vm884
      %v886 = vsel %vm885, %v878, %v882
      %v887 = vand.u32 2147483647, %v691
      %vm888 = vcmp.eq.f32.partialorder %v887, 8.507059e+37
      %v889 = vand.u32 %v691, 2147483648
      %v890 = vor.u32 1.1754944e-38, %v889
      %v891 = vsel %vm888, %v890, %v886
      %v892 = vmul.f32 %v659, %v891
      %v893 = vrcp.pop %v693
      %v894 = vmul.f32 %v693, %v893
      %v895 = vsub.f32 1.0, %v894
      %v896 = vmul.f32 %v893, %v895
      %v897 = vadd.f32 %v893, %v896
      %vm898 = vweird.f32 %v693
      %vm899 = vweird.f32 %v893
      %vm900 = vmor %vm898, %vm899
      %v901 = vsel %vm900, %v893, %v897
      %v902 = vand.u32 2147483647, %v693
      %vm903 = vcmp.eq.f32.partialorder %v902, 8.507059e+37
      %v904 = vand.u32 %v693, 2147483648
      %v905 = vor.u32 1.1754944e-38, %v904
      %v906 = vsel %vm903, %v905, %v901
      %v907 = vmul.f32 %v661, %v906
      %v908 = vrcp.pop %v695
      %v909 = vmul.f32 %v695, %v908
      %v910 = vsub.f32 1.0, %v909
      %v911 = vmul.f32 %v908, %v910
      %v912 = vadd.f32 %v908, %v911
      %vm913 = vweird.f32 %v695
      %vm914 = vweird.f32 %v908
      %vm915 = vmor %vm913, %vm914
      %v916 = vsel %vm915, %v908, %v912
      %v917 = vand.u32 2147483647, %v695
      %vm918 = vcmp.eq.f32.partialorder %v917, 8.507059e+37
      %v919 = vand.u32 %v695, 2147483648
      %v920 = vor.u32 1.1754944e-38, %v919
      %v921 = vsel %vm918, %v920, %v916
      %v922 = vmul.f32 %v663, %v921
      %v923 = vrcp.pop %v697
      %v924 = vmul.f32 %v697, %v923
      %v925 = vsub.f32 1.0, %v924
      %v926 = vmul.f32 %v923, %v925
      %v927 = vadd.f32 %v923, %v926
      %vm928 = vweird.f32 %v697
      %vm929 = vweird.f32 %v923
      %vm930 = vmor %vm928, %vm929
      %v931 = vsel %vm930, %v923, %v927
      %v932 = vand.u32 2147483647, %v697
      %vm933 = vcmp.eq.f32.partialorder %v932, 8.507059e+37
      %v934 = vand.u32 %v697, 2147483648
      %v935 = vor.u32 1.1754944e-38, %v934
      %v936 = vsel %vm933, %v935, %v931
      %v937 = vmul.f32 %v665, %v936
      %vm938 = vcmp.ge.s32.totalorder %v568, 64
      %v939 = vsel %vm938, %v528, 0.0
      %v940 = vsel %vm938, %v530, 0.0
      %v941 = vsel %vm938, %v533, 0.0
      %v942 = vsel %vm938, %v535, 0.0
      %v943 = vsel %vm938, %v538, 0.0
      %v944 = vsel %vm938, %v540, 0.0
      %v945 = vsel %vm938, %v543, 0.0
      %v946 = vsel %vm938, %v545, 0.0
      %v947 = vsel %vm938, %v548, 0.0
      %v948 = vsel %vm938, %v550, 0.0
      %v949 = vsel %vm938, %v553, 0.0
      %v950 = vsel %vm938, %v555, 0.0
      %v951 = vsel %vm938, %v558, 0.0
      %v952 = vsel %vm938, %v560, 0.0
      %v953 = vsel %vm938, %v563, 0.0
      %v954 = vsel %vm938, %v565, 0.0
      %v955 = vadd.f32 %v712, %v939
      %v956 = vadd.f32 %v727, %v940
      %v957 = vadd.f32 %v742, %v941
      %v958 = vadd.f32 %v757, %v942
      %v959 = vadd.f32 %v772, %v943
      %v960 = vadd.f32 %v787, %v944
      %v961 = vadd.f32 %v802, %v945
      %v962 = vadd.f32 %v817, %v946
      %v963 = vadd.f32 %v832, %v947
      %v964 = vadd.f32 %v847, %v948
      %v965 = vadd.f32 %v862, %v949
      %v966 = vadd.f32 %v877, %v950
      %v967 = vadd.f32 %v892, %v951
      %v968 = vadd.f32 %v907, %v952
      %v969 = vadd.f32 %v922, %v953
      %v970 = vadd.f32 %v937, %v954
      %971 = vst [vmem:[%s172] sm:$0xff] %v955
      %972 = vst [vmem:[%s172 + $0x8] sm:$0xff] %v956
      %973 = vst [vmem:[%s172 + $0x10] sm:$0xff] %v957
      %974 = vst [vmem:[%s172 + $0x18] sm:$0xff] %v958
      %975 = vst [vmem:[%s172 + $0x20] sm:$0xff] %v959
      %976 = vst [vmem:[%s172 + $0x28] sm:$0xff] %v960
      %977 = vst [vmem:[%s172 + $0x30] sm:$0xff] %v961
      %978 = vst [vmem:[%s172 + $0x38] sm:$0xff] %v962
      %979 = vst [vmem:[%s172 + $0x40] sm:$0xff] %v963
      %980 = vst [vmem:[%s172 + $0x48] sm:$0xff] %v964
      %981 = vst [vmem:[%s172 + $0x50] sm:$0xff] %v965
      %982 = vst [vmem:[%s172 + $0x58] sm:$0xff] %v966
      %983 = vst [vmem:[%s172 + $0x60] sm:$0xff] %v967
      %984 = vst [vmem:[%s172 + $0x68] sm:$0xff] %v968
      %985 = vst [vmem:[%s172 + $0x70] sm:$0xff] %v969
      %986 = vst [vmem:[%s172 + $0x78] sm:$0xff] %v970
      %s987 = smul.u32 16, %s14
      %p988 = scmp.lt.s32.totalorder %s987, 31
      %s989 = scalar_select %p988, %s987, 31
      %s990 = smul.addr %s989, 8
      %s991 = scalar_lea.vmem %s3, %s990
      // Predicated region
      $region33: #{forward.1} parent=31 // pred_check
        %p992 = pneg %p100
      $region34: #{forward.1} parent=31 // pred_check_branch
        %994 = sbr.rel (%p992) target = $region36
      $region35: #{forward.1} parent=31 // pred_region
        %s995 = smul.u32 16, %s14
      $region36: #{forward.1} parent=31 // pred_fallthru
        _
    $region32: #{forward.1} parent=5 // pred_fallthru
      _
    %p996 = scmp.le.s32.totalorder 2, %s9
    // Predicated region
    $region37: #{forward.1} parent=5 // pred_check
      %p997 = pneg %p996
    $region38: #{forward.1} parent=5 // pred_check_branch
      %999 = sbr.rel (%p997) target = $region40
    $region39: #{forward.1} parent=5 // pred_region
      %s1000 = ssub.s32 %s9, 2
      // Predicated region
      $region41: #{forward.1} parent=39 // pred_check
        %p1001 = pneg %p106
      $region42: #{forward.1} parent=39 // pred_check_branch
        %1003 = sbr.rel (%p1001) target = $region44
      $region43: #{forward.1} parent=39 // pred_region
        %s1004 = smul.u32 16, %s15
        %p1005 = scmp.lt.s32.totalorder %s1004, 31
        %s1006 = scalar_select %p1005, %s1004, 31
        %s1007 = smul.addr %s1006, 8
        %s1008 = scalar_lea.vmem %s3, %s1007
      $region44: #{forward.1} parent=39 // pred_fallthru
        _
    $region40: #{forward.1} parent=5 // pred_fallthru
      _
  $region6: #{forward.1} parent=0 // loop_footer
    %s13 = sadd.s32 1, %s9
  $region7: #{forward.1} parent=0 // loop_footer_branch
    %8 = sbr.rel target = $region3
  $region8: #{forward.1} parent=0 // loop_exit
    _

</llo_original>
